<compile_context>
chip_gen: v7x
topology: tpu7x:2x2x1
jax: 0.10.0
libtpu: 0.0.40
codegen_flags: <defaults>
</compile_context>

<pallas_src>
import jax
import jax.numpy as jnp
from jax.experimental import pallas as pl
from jax.experimental.pallas import tpu as pltpu


def _add_sn_extra_kernel(t_ref, extra_ref, o_ref):
    # t_ref:     (1, TN, F)    current (batch, n-tile) slice of t
    # extra_ref: (TN, E)       matching n-tile of extra (shared across batch)
    # o_ref:     (1, TN, F+E)
    F = t_ref.shape[-1]
    # Two disjoint stores instead of a lane-axis concatenate: no cross-lane
    # relayout, no (1, TN, F+E) temporary; only the E-wide tail is masked.
    o_ref[:, :, :F] = t_ref[...]
    o_ref[:, :, F:] = extra_ref[...][None, :, :]


def _choose_tile_n(N, F, E, itemsize, vmem_budget_bytes=12 * 1024 * 1024):
    """Pick an N-tile so the double-buffered working set fits the budget.

    Working set per grid step ~= 2 * (t block + out block + extra block).
    12 MiB stays under v5e's 16 MiB default scoped VMEM and leaves headroom
    on v7x (64 MiB physical) while still being multi-MiB per block.
    """
    per_row = 2 * (F + (F + E) + E) * itemsize
    tn = vmem_budget_bytes // max(per_row, 1)
    if N <= 8:
        return int(N)                 # full dim: exempt from (8,128) rule
    tn = max(8, min(tn, N))
    return int((tn // 8) * 8)         # sublane-aligned second-to-last dim


def add_sn_extra(t: jax.Array, extra: jax.Array, *, tile_n: int | None = None,
                 use_pallas: bool | None = None,
                 min_pallas_bytes: int = 1 << 20) -> jax.Array:
    """Pallas implementation of AddSNExtra.forward.

    t:     (B, N, F) array
    extra: (N, E)    registered buffer (one [z, Av_MW] row per simulation)
    returns (B, N, F+E) == broadcast_cat((t, extra), dim=-1)
    """
    B, N, F = t.shape
    N2, E = extra.shape
    assert N == N2, "second-to-last axis of t must match rows of extra"

    # Hoisted dtype handling: promote once in the wrapper (never per step).
    out_dtype = jnp.result_type(t.dtype, extra.dtype)
    t = t.astype(out_dtype)
    extra = extra.astype(out_dtype)
    itemsize = jnp.dtype(out_dtype).itemsize

    if use_pallas is None:
        use_pallas = B * N * (F + E) * itemsize >= min_pallas_bytes
    if not use_pallas:
        # Tiny problem: XLA's fused broadcast+concat is already at roofline;
        # pallas_call fixed overhead would dominate.
        return jnp.concatenate(
            [t, jnp.broadcast_to(extra[None, :, :], (B, N, E))], axis=-1)

    tn = tile_n if tile_n is not None else _choose_tile_n(N, F, E, itemsize)
    n_tiles = pl.cdiv(N, tn)

    grid_spec = pltpu.PrefetchScalarGridSpec(
        num_scalar_prefetch=0,
        grid=(B, n_tiles),
        in_specs=[
            pl.BlockSpec((1, tn, F), lambda b, n: (b, n, 0)),
            pl.BlockSpec((tn, E), lambda b, n: (n, 0)),
        ],
        out_specs=pl.BlockSpec((1, tn, F + E), lambda b, n: (b, n, 0)),
    )

    return pl.pallas_call(
        _add_sn_extra_kernel,
        out_shape=jax.ShapeDtypeStruct((B, N, F + E), out_dtype),
        grid_spec=grid_spec,
        compiler_params=pltpu.CompilerParams(
            # Both axes parallel: v7x's two TensorCores shard the grid even
            # when B is 1 or odd; harmless on single-TC v5e/v6e.
            dimension_semantics=("parallel", "parallel"),
            vmem_limit_bytes=32 * 1024 * 1024,
        ),
    )(t, extra)


def build_extra_buffer(num_sims: int) -> jax.Array:
    """Deterministically build the `extra` buffer like AddSNExtra.__init__.

    Row i = [z_i, Av_MW_i] (extra_keys=('z', 'Av_MW')) -> shape (num_sims, 2).
    """
    i = jnp.arange(num_sims, dtype=jnp.float32)
    z = 0.1 * (i + 1.0)       # deterministic synthetic redshift
    av = 0.05 * (i + 2.0)     # deterministic synthetic MW extinction
    return jnp.stack([z, av], axis=-1)


if __name__ == "__main__":
    key = jax.random.PRNGKey(0)

    # Small shapes: 16 synthetic sims, batch 2, F=128 so the main output store
    # is lane-dense (only the 2-wide extra tail is a masked store).
    num_sims = 16                     # N (rows of `extra`)
    B = 2
    F = 128
    E = 2                             # ('z', 'Av_MW')

    extra = build_extra_buffer(num_sims)                            # (16, 2)
    t = jax.random.normal(key, (B, num_sims, F), dtype=jnp.float32)  # (2,16,128)

    # Force the Pallas path: the size heuristic would (correctly) route this
    # tiny demo to the plain-XLA fallback otherwise.
    out = add_sn_extra(t, extra, use_pallas=True)
    out = jax.block_until_ready(out)

    # Pure-JAX reference for broadcast_cat((t, extra), dim=-1).
    ref = jnp.concatenate(
        [t, jnp.broadcast_to(extra[None, :, :], (B, num_sims, E))], axis=-1)
    assert out.shape == (B, num_sims, F + E)
    assert jnp.allclose(out, ref), "Pallas AddSNExtra mismatch vs reference"

    print("KERNEL_OK")
</pallas_src>

<mosaic_0001>
module attributes {stable_mosaic.version = 11 : i64} {
  func.func @_add_sn_extra_kernel(%arg0: i32, %arg1: i32, %arg2: memref<1x16x128xf32, #tpu.memory_space<vmem>>, %arg3: memref<16x2xf32, #tpu.memory_space<vmem>>, %arg4: memref<1x16x130xf32, #tpu.memory_space<vmem>>) attributes {dimension_semantics = [#tpu.dimension_semantics<parallel>, #tpu.dimension_semantics<parallel>], iteration_bounds = array<i64: 2, 1>, scalar_prefetch = 0 : i64, scratch_operands = 0 : i64, tpu.core_type = #tpu.core_type<tc>, window_params = [{transform_indices = @transform_0, window_bounds = array<i64: 1, 16, 128>}, {transform_indices = @transform_1, window_bounds = array<i64: 16, 2>}, {transform_indices = @transform_2, window_bounds = array<i64: 1, 16, 130>}]} {
    %c0 = arith.constant 0 : index
    %c0_0 = arith.constant 0 : index
    %c0_1 = arith.constant 0 : index
    %0 = vector.load %arg2[%c0, %c0_0, %c0_1] : memref<1x16x128xf32, #tpu.memory_space<vmem>>, vector<1x16x128xf32>
    %c0_2 = arith.constant 0 : index
    %c0_3 = arith.constant 0 : index
    %c0_4 = arith.constant 0 : index
    %1 = vector.load %arg4[%c0_2, %c0_3, %c0_4] : memref<1x16x130xf32, #tpu.memory_space<vmem>>, vector<1x16x128xf32>
    tpu.vector_store %arg4[%c0_2, %c0_3, %c0_4], %0 {strides = array<i32>} : memref<1x16x130xf32, #tpu.memory_space<vmem>>, vector<1x16x128xf32>,
    %c0_5 = arith.constant 0 : index
    %c0_6 = arith.constant 0 : index
    %2 = vector.load %arg3[%c0_5, %c0_6] : memref<16x2xf32, #tpu.memory_space<vmem>>, vector<16x2xf32>
    %3 = vector.shape_cast %2 : vector<16x2xf32> to vector<1x16x2xf32>
    %c0_7 = arith.constant 0 : index
    %c0_8 = arith.constant 0 : index
    %c128 = arith.constant 128 : index
    %4 = vector.load %arg4[%c0_7, %c0_8, %c128] : memref<1x16x130xf32, #tpu.memory_space<vmem>>, vector<1x16x2xf32>
    tpu.vector_store %arg4[%c0_7, %c0_8, %c128], %3 {strides = array<i32>} : memref<1x16x130xf32, #tpu.memory_space<vmem>>, vector<1x16x2xf32>,
    return
  }
  func.func @transform_0(%arg0: i32, %arg1: i32) -> (i32, i32, i32) {
    %c0_i32 = arith.constant 0 : i32
    %c0_i32_0 = arith.constant 0 : i32
    return %arg0, %arg1, %c0_i32 : i32, i32, i32
  }
  func.func @transform_1(%arg0: i32, %arg1: i32) -> (i32, i32) {
    %c0_i32 = arith.constant 0 : i32
    %c0_i32_0 = arith.constant 0 : i32
    return %arg1, %c0_i32 : i32, i32
  }
  func.func @transform_2(%arg0: i32, %arg1: i32) -> (i32, i32, i32) {
    %c0_i32 = arith.constant 0 : i32
    %c0_i32_0 = arith.constant 0 : i32
    return %arg0, %arg1, %c0_i32 : i32, i32, i32
  }
}

</mosaic_0001>

<llo_original>
// kernel: tpu_custom_call.1
$region0: #{tpu_custom_call.1}
  #allocation0 [shape = 'u32[]', space=smem, size = 0x4, offset = 0x4, fixed_abs, tag = 'smem constant byte address 0x4 - core index']
  #allocation1 [shape = 'u32[144,128]{1,0:T(1,128)}', space=vmem, size = 0x12000, scoped, tag = 'internal scratch']
  %s0 = inlined_call_operand.hbm [shape: f32[2,16,128], index: 0, kind: input, shape index: {}]
  %s1 = inlined_call_operand.vmem [shape: f32[16,2], index: 1, kind: input, shape index: {}]
  %s2 = inlined_call_operand.hbm [shape: f32[2,16,130], index: 2, kind: output, shape index: {}]
  %s3 = sld [smem:[#allocation0]]
  $region45: #{tpu_custom_call.1} parent=0
    _
  %s5 = ssub.s32 1, %s3
  %s6 = scalar_select 0, %s5, %s3
  $region1: #{tpu_custom_call.1} parent=0
    #allocation2 [shape = 'u8[16384]{0}', space=vmem, size = 0x4000, scoped, tag = 'input window, operand 0']
    #allocation3 [shape = 's32[2]{0}', space=sflag, size = 0x8, scoped, tag = 'scoped memory for tpu_custom_call.1']
    #allocation4 [shape = 's32[2]{0}', space=sflag, size = 0x8, scoped, tag = 'scoped memory for tpu_custom_call.1']
    #allocation5 [shape = 'u8[32768]{0}', space=vmem, size = 0x8000, scoped, tag = 'output window, operand 0']
    %7 = vsyncpa [#allocation3], 0
    %s8 = scalar_lea.sflag [#allocation3], 1
    %9 = vsyncpa %s8, 0
    %10 = vsyncpa [#allocation4], 0
    %s11 = scalar_lea.sflag [#allocation4], 1
    %12 = vsyncpa %s11, 0
    loop: start=0, step=1, limit=4
    $region2: #{tpu_custom_call.1} parent=1 // loop_pre_header
      _
    $region3: #{tpu_custom_call.1} parent=1 // loop_header
      %s14 = sphi 0, %s18
      %p15 = scmp.ge.s32.totalorder %s14, 4
      %s21 = sphi 0, %s33
      %s22 = sphi 0, %s29
      %s23 = sphi 0, %s21
      %s24 = sphi 0, %s22
      %s25 = sphi 0, %s23
      %s26 = sphi 0, %s24
      %s38 = sphi 0, %s40
      %s41 = sphi 0, %s38
      %s42 = sphi 0, %s41
      %s58 = sphi 0, %s42
      %s64 = sphi 0, %s66
      %s67 = sphi 0, %s64
      %s68 = sphi 0, %s67
      %s84 = sphi 0, %s68
      %s92 = sphi 0, %s94
      %s95 = sphi 0, %s92
      %s96 = sphi 0, %s95
      %s112 = sphi 0, %s96
    $region4: #{tpu_custom_call.1} parent=1 // loop_header_branch
      %17 = sbr.rel (%p15) target = $region8
    $region5: #{tpu_custom_call.1} parent=1 // loop_body
      %s19 = ssub.s32 %s14, 1
      %s20 = ssub.s32 %s14, 2
      %s27 = sadd.s32 1, %s22
      %p28 = scmp.ge.s32.totalorder %s27, 1
      %s29 = scalar_select %p28, 0, %s27
      %s30 = sadd.s32 1, %s21
      %s31 = scalar_select %p28, %s30, %s21
      %p32 = scmp.ge.s32.totalorder %s31, 2
      %s33 = scalar_select %p32, 0, %s31
      %s34 = ssub.s32 %s21, %s33
      %s35 = ssub.s32 %s22, %s29
      %s36 = sor.u32 %s34, %s35
      %p37 = scmp.eq.s32.totalorder %s36, 0
      %s39 = sadd.s32 %s38, 1
      %s40 = scalar_select %p37, %s38, %s39
      %p43 = pneg %p37
      %p44 = scmp.eq.s32.totalorder %s14, 1
      %p45 = por %p43, %p44
      %p46 = scmp.ne.s32.totalorder %s38, %s41
      %p47 = scmp.eq.s32.totalorder %s14, 0
      %p48 = por %p46, %p47
      %p49 = scmp.ne.s32.totalorder %s38, %s41
      %p50 = scmp.eq.s32.totalorder %s19, 1
      %p51 = por %p49, %p50
      %p52 = scmp.ne.s32.totalorder %s41, %s42
      %p53 = scmp.eq.s32.totalorder %s19, 0
      %p54 = por %p52, %p53
      %p55 = scmp.ne.s32.totalorder %s41, %s42
      %p56 = scmp.eq.s32.totalorder %s20, 1
      %p57 = por %p55, %p56
      %p59 = scmp.ne.s32.totalorder %s42, %s58
      %p60 = scmp.eq.s32.totalorder %s20, 0
      %p61 = por %p59, %p60
      %s62 = ssub.s32 %s22, %s29
      %p63 = scmp.eq.s32.totalorder %s62, 0
      %s65 = sadd.s32 %s64, 1
      %s66 = scalar_select %p63, %s64, %s65
      %p69 = pneg %p63
      %p70 = scmp.eq.s32.totalorder %s14, 1
      %p71 = por %p69, %p70
      %p72 = scmp.ne.s32.totalorder %s64, %s67
      %p73 = scmp.eq.s32.totalorder %s14, 0
      %p74 = por %p72, %p73
      %p75 = scmp.ne.s32.totalorder %s64, %s67
      %p76 = scmp.eq.s32.totalorder %s19, 1
      %p77 = por %p75, %p76
      %p78 = scmp.ne.s32.totalorder %s67, %s68
      %p79 = scmp.eq.s32.totalorder %s19, 0
      %p80 = por %p78, %p79
      %p81 = scmp.ne.s32.totalorder %s67, %s68
      %p82 = scmp.eq.s32.totalorder %s20, 1
      %p83 = por %p81, %p82
      %p85 = scmp.ne.s32.totalorder %s68, %s84
      %p86 = scmp.eq.s32.totalorder %s20, 0
      %p87 = por %p85, %p86
      %s88 = ssub.s32 %s21, %s33
      %s89 = ssub.s32 %s22, %s29
      %s90 = sor.u32 %s88, %s89
      %p91 = scmp.eq.s32.totalorder %s90, 0
      %s93 = sadd.s32 %s92, 1
      %s94 = scalar_select %p91, %s92, %s93
      %p97 = pneg %p91
      %p98 = scmp.eq.s32.totalorder %s14, 1
      %p99 = por %p97, %p98
      %p100 = scmp.ne.s32.totalorder %s92, %s95
      %p101 = scmp.eq.s32.totalorder %s14, 0
      %p102 = por %p100, %p101
      %p103 = scmp.ne.s32.totalorder %s92, %s95
      %p104 = scmp.eq.s32.totalorder %s19, 1
      %p105 = por %p103, %p104
      %p106 = scmp.ne.s32.totalorder %s95, %s96
      %p107 = scmp.eq.s32.totalorder %s19, 0
      %p108 = por %p106, %p107
      %p109 = scmp.ne.s32.totalorder %s95, %s96
      %p110 = scmp.eq.s32.totalorder %s20, 1
      %p111 = por %p109, %p110
      %p113 = scmp.ne.s32.totalorder %s96, %s112
      %p114 = scmp.eq.s32.totalorder %s20, 0
      %p115 = por %p113, %p114
      %p116 = scmp.le.s32.totalorder 1, %s14
      %p117 = scmp.lt.s32.totalorder %s14, 3
      %p118 = pnand %p116, %p117
      %p119 = pneg %p118
      // Predicated region
      $region9: #{tpu_custom_call.1} parent=5 // pred_check
        _
      $region10: #{tpu_custom_call.1} parent=5 // pred_check_branch
        %121 = sbr.rel (%p118) target = $region12
      $region11: #{tpu_custom_call.1} parent=5 // pred_region
        %s122 = ssub.s32 %s14, 1
        // Predicated region
        $region13: #{tpu_custom_call.1} parent=11 // pred_check
          %p123 = pneg %p80
        $region14: #{tpu_custom_call.1} parent=11 // pred_check_branch
          %125 = sbr.rel (%p123) target = $region16
        $region15: #{tpu_custom_call.1} parent=11 // pred_region
          %s126 = smul.u32 2, %s24
          %p127 = scmp.lt.s32.totalorder %s126, 1
          %s128 = scalar_select %p127, %s126, 1
          %s129 = smul.addr %s128, 8
          %s130 = scalar_lea.vmem %s1, %s129
          %s131 = smul.u32 2, %s24
        $region16: #{tpu_custom_call.1} parent=11 // pred_fallthru
          _
      $region12: #{tpu_custom_call.1} parent=5 // pred_fallthru
        _
      %p132 = scmp.lt.s32.totalorder %s14, 2
      // Predicated region
      $region17: #{tpu_custom_call.1} parent=5 // pred_check
        %p133 = pneg %p132
      $region18: #{tpu_custom_call.1} parent=5 // pred_check_branch
        %135 = sbr.rel (%p133) target = $region20
      $region19: #{tpu_custom_call.1} parent=5 // pred_region
        // Predicated region
        $region21: #{tpu_custom_call.1} parent=19 // pred_check
          %p136 = pneg %p48
        $region22: #{tpu_custom_call.1} parent=19 // pred_check_branch
          %138 = sbr.rel (%p136) target = $region24
        $region23: #{tpu_custom_call.1} parent=19 // pred_region
          %s139 = sand.u32 %s38, 1
          %s140 = scalar_lea.sflag [#allocation3], %s139
          %s141 = sand.u32 %s38, 1
          %s142 = smul.addr %s141, 16
          %s143 = scalar_lea.vmem [#allocation2], %s142
          %s144 = smul.u32 2, %s22
          %s146 = ssub.s32 256, 256
          %147 = vsyncadd %s140, %s146
          %s148 = smul.addr %s21, 2
          %s149 = sadd.s32 %s144, %s148
          %s150 = smul.addr %s149, 128
          %s151 = scalar_lea.hbm %s0, %s150
          %s152 = sshll.u32 %s143, 4
          %s153 = int_to_ptr.vmem [resolvable:$true] %s152
          %158 = dma.hbm_to_vmem [thread:$0]  %s151, 256, %s153, %s140, 128, 128, 8
        $region24: #{tpu_custom_call.1} parent=19 // pred_fallthru
          _
      $region20: #{tpu_custom_call.1} parent=5 // pred_fallthru
        _
      %p159 = scmp.le.s32.totalorder 1, %s14
      %p160 = scmp.lt.s32.totalorder %s14, 3
      %p161 = pnand %p159, %p160
      %p162 = pneg %p161
      // Predicated region
      $region25: #{tpu_custom_call.1} parent=5 // pred_check
        _
      $region26: #{tpu_custom_call.1} parent=5 // pred_check_branch
        %164 = sbr.rel (%p161) target = $region28
      $region27: #{tpu_custom_call.1} parent=5 // pred_region
        %s165 = ssub.s32 %s14, 1
        %s166 = sand.u32 %s41, 1
        %s167 = scalar_lea.sflag [#allocation3], %s166
        %s168 = sand.u32 %s41, 1
        %s169 = smul.addr %s168, 16
        %s170 = scalar_lea.vmem [#allocation2], %s169
        // Predicated region
        $region29: #{tpu_custom_call.1} parent=27 // pred_check
          %p171 = pneg %p54
        $region30: #{tpu_custom_call.1} parent=27 // pred_check_branch
          %173 = sbr.rel (%p171) target = $region32
        $region31: #{tpu_custom_call.1} parent=27 // pred_region
          %174 = dma.done %s167, 256
        $region32: #{tpu_custom_call.1} parent=27 // pred_fallthru
          _
        %s175 = sand.u32 %s41, 1
        %s176 = scalar_lea.sflag [#allocation3], %s175
        %s177 = sand.u32 %s41, 1
        %s178 = smul.addr %s177, 16
        %s179 = scalar_lea.vmem [#allocation2], %s178
        %p180 = pneg %p54
        %p181 = pneg %p51
        %s182 = smul.u32 2, %s24
        %p183 = scmp.lt.s32.totalorder %s182, 1
        %s184 = scalar_select %p183, %s182, 1
        %s185 = smul.addr %s184, 8
        %s186 = scalar_lea.vmem %s1, %s185
        %p187 = pneg %p80
        %p188 = pneg %p77
        %p189 = pneg %p108
        %p190 = pneg %p105
        %s191 = sand.u32 %s95, 1
        %s192 = scalar_lea.sflag [#allocation4], %s191
        %s193 = sand.u32 %s95, 1
        %s194 = smul.addr %s193, 32
        %s195 = scalar_lea.vmem [#allocation5], %s194
        %s196 = smul.u32 2, %s24
        %s197 = smul.u32 2, %s24
        %p198 = scmp.lt.s32.totalorder %s197, 1
        %s199 = scalar_select %p198, %s197, 1
        %s200 = smul.addr %s199, 8
        %s201 = scalar_lea.vmem %s1, %s200
        %s202 = smul.u32 2, %s24
        %s203 = smul.u32 2, %s24
        %v204 = vld [vmem:[%s170] sm:$0xff]
        %v205 = vld [vmem:[%s170 + $0x8] sm:$0xff]
        %206 = vst [vmem:[%s195] sm:$0xff] %v204
        %207 = vst [vmem:[%s195 + $0x10] sm:$0xff] %v205
        %v208 = vld [vmem:[%s201] sm:$0xff]
        %v209 = vld [vmem:[%s201 + $0x8] sm:$0xff]
        %vm210 = vcmask 15360
        %211 = vst.msk [vmem:[%s195 + $0x8] sm:$0xff] %vm210, %v208
        %212 = vst.msk [vmem:[%s195 + $0x18] sm:$0xff] %vm210, %v209
        %s213 = sand.u32 %s95, 1
        %s214 = scalar_lea.sflag [#allocation4], %s213
        %s215 = sand.u32 %s95, 1
        %s216 = smul.addr %s215, 32
        %s217 = scalar_lea.vmem [#allocation5], %s216
        // Predicated region
        $region33: #{tpu_custom_call.1} parent=27 // pred_check
          %p218 = pneg %p105
        $region34: #{tpu_custom_call.1} parent=27 // pred_check_branch
          %220 = sbr.rel (%p218) target = $region36
        $region35: #{tpu_custom_call.1} parent=27 // pred_region
          %s221 = smul.u32 2, %s24
          %s223 = ssub.s32 512, 512
          %224 = vsyncadd %s214, %s223
          %s225 = smul.addr %s221, 2
          %s226 = smul.addr %s23, 4
          %s227 = sadd.s32 %s225, %s226
          %s228 = smul.addr %s227, 128
          %s229 = scalar_lea.hbm %s2, %s228
          %s230 = sshll.u32 %s217, 4
          %s231 = int_to_ptr.vmem [resolvable:$true] %s230
          %236 = dma.vmem_to_hbm [thread:$0]  %s231, 512, %s229, %s214, 256, 256, 16
        $region36: #{tpu_custom_call.1} parent=27 // pred_fallthru
          _
      $region28: #{tpu_custom_call.1} parent=5 // pred_fallthru
        _
      %p237 = scmp.le.s32.totalorder 2, %s14
      // Predicated region
      $region37: #{tpu_custom_call.1} parent=5 // pred_check
        %p238 = pneg %p237
      $region38: #{tpu_custom_call.1} parent=5 // pred_check_branch
        %240 = sbr.rel (%p238) target = $region40
      $region39: #{tpu_custom_call.1} parent=5 // pred_region
        %s241 = ssub.s32 %s14, 2
        // Predicated region
        $region41: #{tpu_custom_call.1} parent=39 // pred_check
          %p242 = pneg %p111
        $region42: #{tpu_custom_call.1} parent=39 // pred_check_branch
          %244 = sbr.rel (%p242) target = $region44
        $region43: #{tpu_custom_call.1} parent=39 // pred_region
          %s245 = sand.u32 %s96, 1
          %s246 = scalar_lea.sflag [#allocation4], %s245
          %s247 = sand.u32 %s96, 1
          %s248 = smul.addr %s247, 32
          %s249 = scalar_lea.vmem [#allocation5], %s248
          %250 = dma.done %s246, 512
        $region44: #{tpu_custom_call.1} parent=39 // pred_fallthru
          _
      $region40: #{tpu_custom_call.1} parent=5 // pred_fallthru
        _
    $region6: #{tpu_custom_call.1} parent=1 // loop_footer
      %s18 = sadd.s32 1, %s14
    $region7: #{tpu_custom_call.1} parent=1 // loop_footer_branch
      %13 = sbr.rel target = $region3
    $region8: #{tpu_custom_call.1} parent=1 // loop_exit
      _
    %251 = vsyncpa [#allocation3], 1
    %s252 = scalar_lea.sflag [#allocation3], 1
    %253 = vsyncpa %s252, 1
    %254 = vsyncpa [#allocation4], 1
    %s255 = scalar_lea.sflag [#allocation4], 1
    %256 = vsyncpa %s255, 1

</llo_original>
